<compile_context>
chip_gen: v5e
topology: v5e:2x2
jax: 0.10.0
libtpu: 0.0.40
codegen_flags: <defaults>
</compile_context>

<pallas_src>
import functools

import jax
import jax.numpy as jnp
from jax.experimental import pallas as pl
from jax.experimental.pallas import tpu as pltpu


def _round_up(x, m):
    return ((x + m - 1) // m) * m


# ----------------------------------------------------------------------------
# Kernel
# ----------------------------------------------------------------------------
def vae_kernel(x_ref, eps_ref, w1_ref, b1_ref, vec_ref, w5_ref, b5_ref, out_ref):
    x = x_ref[...]                                                      # (Bt, F_pad)

    # ---- encoder: fc1 + relu (MXU) -----------------------------------------
    h = jnp.dot(x, w1_ref[...], preferred_element_type=jnp.float32) + b1_ref[...]
    h = jnp.maximum(h, 0.0)                                             # (Bt, H_pad)
    # Lane `hidden` of h is the constant 1.0 (bias trick); padded lanes are 0.

    w2 = vec_ref[0:1, :]     # mu head weights   (b2 folded into lane `hidden`)
    w3 = vec_ref[1:2, :]     # log_var head weights (b3 folded likewise)
    w4 = vec_ref[2:3, :]     # fc4 weight row (1 -> hidden)
    b4 = vec_ref[3:4, :]     # fc4 bias row

    # ---- latent heads on VPU/XLU (rank-1 contractions, no MXU) -------------
    mu = jnp.sum(h * w2, axis=-1, keepdims=True)                        # (Bt, 1)
    log_var = jnp.sum(h * w3, axis=-1, keepdims=True)                   # (Bt, 1)

    # ---- reparameterize: z = mu + exp(0.5 * log_var) * eps -----------------
    z = mu + jnp.exp(log_var * 0.5) * eps_ref[...]                      # (Bt, 1)

    # ---- decoder: fc4 as broadcast outer product (VPU) + relu --------------
    d = jnp.maximum(z * w4 + b4, 0.0)                                   # (Bt, H_pad)

    # ---- fc5 (MXU), lane-dense output store --------------------------------
    out = jnp.dot(d, w5_ref[...], preferred_element_type=jnp.float32) + b5_ref[...]
    out_ref[...] = out.astype(out_ref.dtype)                            # (Bt, F_pad)


# ----------------------------------------------------------------------------
# Wrapper
# ----------------------------------------------------------------------------
def vae_forward(x, eps, packed, *, block_b=256):
    """x: (B, input_size) f32, eps: (B, 1) f32, packed: output of pack_params."""
    B, F = x.shape
    F_pad, H_pad = packed["F_pad"], packed["H_pad"]

    bt = min(block_b, _round_up(B, 8))          # batch tile (multiple of 8)
    Bp = _round_up(B, bt)

    # Zero-pad batch and lanes once in the wrapper (cheap at these sizes).
    xp = jnp.zeros((Bp, F_pad), jnp.float32).at[:B, :F].set(x)
    epsp = jnp.zeros((Bp, 1), jnp.float32).at[:B, :].set(eps)

    grid = (Bp // bt,)
    out = pl.pallas_call(
        vae_kernel,
        out_shape=jax.ShapeDtypeStruct((Bp, F_pad), jnp.float32),
        grid=grid,
        in_specs=[
            pl.BlockSpec((bt, F_pad), lambda i: (i, 0)),        # x tile
            pl.BlockSpec((bt, 1), lambda i: (i, 0)),            # eps tile
            pl.BlockSpec((F_pad, H_pad), lambda i: (0, 0)),     # w1 (resident)
            pl.BlockSpec((1, H_pad), lambda i: (0, 0)),         # b1 (resident)
            pl.BlockSpec((4, H_pad), lambda i: (0, 0)),         # packed head vecs
            pl.BlockSpec((H_pad, F_pad), lambda i: (0, 0)),     # w5 (resident)
            pl.BlockSpec((1, F_pad), lambda i: (0, 0)),         # b5 (resident)
        ],
        out_specs=pl.BlockSpec((bt, F_pad), lambda i: (i, 0)),
        compiler_params=pltpu.CompilerParams(
            dimension_semantics=("parallel",),                  # megacore split on v7x
        ),
    )(xp, epsp, packed["w1"], packed["b1"], packed["vec"], packed["w5"], packed["b5"])

    return out[:B, :F]


# ----------------------------------------------------------------------------
# Parameter init (PyTorch nn.Linear default) + packing/padding for the kernel
# ----------------------------------------------------------------------------
def init_params(key, input_size, hidden=32, latent=1):
    """Weights stored as (in, out) so math is x @ W + b; biases as (1, out)."""
    def linear(k, fan_in, fan_out):
        kw, kb = jax.random.split(k)
        bound = 1.0 / jnp.sqrt(fan_in)
        w = jax.random.uniform(kw, (fan_in, fan_out), jnp.float32, -bound, bound)
        b = jax.random.uniform(kb, (1, fan_out), jnp.float32, -bound, bound)
        return w, b

    k1, k2, k3, k4, k5 = jax.random.split(key, 5)
    w1, b1 = linear(k1, input_size, hidden)   # fc1: input_size -> 32
    w2, b2 = linear(k2, hidden, latent)       # fc2: 32 -> 1 (mu)
    w3, b3 = linear(k3, hidden, latent)       # fc3: 32 -> 1 (log_var)
    w4, b4 = linear(k4, latent, hidden)       # fc4: 1 -> 32
    w5, b5 = linear(k5, hidden, input_size)   # fc5: 32 -> input_size
    return dict(w1=w1, b1=b1, w2=w2, b2=b2, w3=w3, b3=b3,
                w4=w4, b4=b4, w5=w5, b5=b5)


def pack_params(params, input_size, hidden=32):
    """Pad everything to 128-lane-dense tiles and fold b2/b3 via a constant-1
    hidden lane (lane index `hidden`)."""
    F_pad = _round_up(input_size, 128)
    H_pad = _round_up(hidden + 1, 128)        # +1 guarantees a spare lane for the bias trick

    w1p = jnp.zeros((F_pad, H_pad), jnp.float32).at[:input_size, :hidden].set(params["w1"])
    b1p = (jnp.zeros((1, H_pad), jnp.float32)
           .at[:, :hidden].set(params["b1"])
           .at[0, hidden].set(1.0))                       # constant-1 hidden unit

    vec = jnp.zeros((4, H_pad), jnp.float32)
    vec = vec.at[0, :hidden].set(params["w2"][:, 0]).at[0, hidden].set(params["b2"][0, 0])
    vec = vec.at[1, :hidden].set(params["w3"][:, 0]).at[1, hidden].set(params["b3"][0, 0])
    vec = vec.at[2, :hidden].set(params["w4"][0, :])      # fc4 weight row
    vec = vec.at[3, :hidden].set(params["b4"][0, :])      # fc4 bias row

    w5p = jnp.zeros((H_pad, F_pad), jnp.float32).at[:hidden, :input_size].set(params["w5"])
    b5p = jnp.zeros((1, F_pad), jnp.float32).at[:, :input_size].set(params["b5"])

    return dict(w1=w1p, b1=b1p, vec=vec, w5=w5p, b5=b5p, F_pad=F_pad, H_pad=H_pad)


def vae_reference(x, eps, params):
    """Pure-JAX reference matching the PyTorch module forward."""
    h = jnp.maximum(x @ params["w1"] + params["b1"], 0.0)
    mu = h @ params["w2"] + params["b2"]
    log_var = h @ params["w3"] + params["b3"]
    z = mu + jnp.exp(0.5 * log_var) * eps
    d = jnp.maximum(z @ params["w4"] + params["b4"], 0.0)
    return d @ params["w5"] + params["b5"]


if __name__ == "__main__":
    key = jax.random.PRNGKey(0)
    k_params, k_x, k_eps = jax.random.split(key, 3)

    batch = 128
    input_size = 16

    params = init_params(k_params, input_size)
    packed = pack_params(params, input_size)

    x = jax.random.normal(k_x, (batch, input_size), jnp.float32)
    # torch.randn(log_var.shape) equivalent (latent=1), passed explicitly.
    eps = jax.random.normal(k_eps, (batch, 1), jnp.float32)

    # block_b=64 -> grid=(2,), parallel across cores where available.
    out = vae_forward(x, eps, packed, block_b=64)
    jax.block_until_ready(out)

    assert out.shape == (batch, input_size), out.shape
    assert out.dtype == jnp.float32, out.dtype

    ref = vae_reference(x, eps, params)
    max_err = float(jnp.max(jnp.abs(out - ref)))
    assert max_err < 1e-4, f"mismatch vs reference: {max_err}"

    print("KERNEL_OK")
</pallas_src>

<mosaic_0001>
module attributes {stable_mosaic.version = 11 : i64} {
  func.func @vae_kernel(%arg0: i32, %arg1: memref<64x128xf32, #tpu.memory_space<vmem>>, %arg2: memref<64x1xf32, #tpu.memory_space<vmem>>, %arg3: memref<128x128xf32, #tpu.memory_space<vmem>>, %arg4: memref<1x128xf32, #tpu.memory_space<vmem>>, %arg5: memref<4x128xf32, #tpu.memory_space<vmem>>, %arg6: memref<128x128xf32, #tpu.memory_space<vmem>>, %arg7: memref<1x128xf32, #tpu.memory_space<vmem>>, %arg8: memref<64x128xf32, #tpu.memory_space<vmem>>) attributes {dimension_semantics = [#tpu.dimension_semantics<parallel>], iteration_bounds = array<i64: 2>, scalar_prefetch = 0 : i64, scratch_operands = 0 : i64, tpu.core_type = #tpu.core_type<tc>, window_params = [{transform_indices = @transform_0, window_bounds = array<i64: 64, 128>}, {transform_indices = @transform_1, window_bounds = array<i64: 64, 1>}, {pipeline_mode = #tpu.pipeline_mode<synchronous>, transform_indices = @transform_2, window_bounds = array<i64: 128, 128>}, {pipeline_mode = #tpu.pipeline_mode<synchronous>, transform_indices = @transform_3, window_bounds = array<i64: 1, 128>}, {pipeline_mode = #tpu.pipeline_mode<synchronous>, transform_indices = @transform_4, window_bounds = array<i64: 4, 128>}, {pipeline_mode = #tpu.pipeline_mode<synchronous>, transform_indices = @transform_5, window_bounds = array<i64: 128, 128>}, {pipeline_mode = #tpu.pipeline_mode<synchronous>, transform_indices = @transform_6, window_bounds = array<i64: 1, 128>}, {transform_indices = @transform_7, window_bounds = array<i64: 64, 128>}]} {
    %c0 = arith.constant 0 : index
    %c0_0 = arith.constant 0 : index
    %0 = vector.load %arg1[%c0, %c0_0] : memref<64x128xf32, #tpu.memory_space<vmem>>, vector<64x128xf32>
    %c0_1 = arith.constant 0 : index
    %c0_2 = arith.constant 0 : index
    %1 = vector.load %arg3[%c0_1, %c0_2] : memref<128x128xf32, #tpu.memory_space<vmem>>, vector<128x128xf32>
    %cst = arith.constant dense<0.000000e+00> : vector<64x128xf32>
    %2 = tpu.matmul %0, %1, %cst {dimension_numbers = #tpu.dot_dimension_numbers<[1], [0], [0], [1], [0, 0, 1, 1], [], []>} : vector<64x128xf32>, vector<128x128xf32>, vector<64x128xf32> -> vector<64x128xf32>
    %c0_3 = arith.constant 0 : index
    %c0_4 = arith.constant 0 : index
    %3 = vector.load %arg4[%c0_3, %c0_4] : memref<1x128xf32, #tpu.memory_space<vmem>>, vector<1x128xf32>
    %4 = vector.broadcast %3 : vector<1x128xf32> to vector<64x128xf32>
    %5 = arith.addf %2, %4 : vector<64x128xf32>
    %cst_5 = arith.constant 0.000000e+00 : f32
    %6 = vector.broadcast %cst_5 : f32 to vector<64x128xf32>
    %7 = arith.maximumf %5, %6 : vector<64x128xf32>
    %c0_6 = arith.constant 0 : index
    %c0_7 = arith.constant 0 : index
    %8 = vector.load %arg5[%c0_6, %c0_7] : memref<4x128xf32, #tpu.memory_space<vmem>>, vector<1x128xf32>
    %c1 = arith.constant 1 : index
    %c0_8 = arith.constant 0 : index
    %9 = vector.load %arg5[%c1, %c0_8] : memref<4x128xf32, #tpu.memory_space<vmem>>, vector<1x128xf32>
    %c2 = arith.constant 2 : index
    %c0_9 = arith.constant 0 : index
    %10 = vector.load %arg5[%c2, %c0_9] : memref<4x128xf32, #tpu.memory_space<vmem>>, vector<1x128xf32>
    %c3 = arith.constant 3 : index
    %c0_10 = arith.constant 0 : index
    %11 = vector.load %arg5[%c3, %c0_10] : memref<4x128xf32, #tpu.memory_space<vmem>>, vector<1x128xf32>
    %12 = vector.broadcast %8 : vector<1x128xf32> to vector<64x128xf32>
    %13 = arith.mulf %7, %12 : vector<64x128xf32>
    %cst_11 = arith.constant dense<0.000000e+00> : vector<64xf32>
    %14 = vector.multi_reduction <add>, %13, %cst_11 [1] : vector<64x128xf32> to vector<64xf32>
    %15 = vector.shape_cast %14 : vector<64xf32> to vector<64x1xf32>
    %16 = vector.broadcast %9 : vector<1x128xf32> to vector<64x128xf32>
    %17 = arith.mulf %7, %16 : vector<64x128xf32>
    %cst_12 = arith.constant dense<0.000000e+00> : vector<64xf32>
    %18 = vector.multi_reduction <add>, %17, %cst_12 [1] : vector<64x128xf32> to vector<64xf32>
    %19 = vector.shape_cast %18 : vector<64xf32> to vector<64x1xf32>
    %cst_13 = arith.constant 5.000000e-01 : f32
    %20 = vector.broadcast %cst_13 : f32 to vector<64x1xf32>
    %21 = arith.mulf %19, %20 : vector<64x1xf32>
    %22 = math.exp %21 : vector<64x1xf32>
    %c0_14 = arith.constant 0 : index
    %c0_15 = arith.constant 0 : index
    %23 = vector.load %arg2[%c0_14, %c0_15] : memref<64x1xf32, #tpu.memory_space<vmem>>, vector<64x1xf32>
    %24 = arith.mulf %22, %23 : vector<64x1xf32>
    %25 = arith.addf %15, %24 : vector<64x1xf32>
    %26 = vector.broadcast %25 : vector<64x1xf32> to vector<64x128xf32>
    %27 = vector.broadcast %10 : vector<1x128xf32> to vector<64x128xf32>
    %28 = arith.mulf %26, %27 : vector<64x128xf32>
    %29 = vector.broadcast %11 : vector<1x128xf32> to vector<64x128xf32>
    %30 = arith.addf %28, %29 : vector<64x128xf32>
    %cst_16 = arith.constant 0.000000e+00 : f32
    %31 = vector.broadcast %cst_16 : f32 to vector<64x128xf32>
    %32 = arith.maximumf %30, %31 : vector<64x128xf32>
    %c0_17 = arith.constant 0 : index
    %c0_18 = arith.constant 0 : index
    %33 = vector.load %arg6[%c0_17, %c0_18] : memref<128x128xf32, #tpu.memory_space<vmem>>, vector<128x128xf32>
    %cst_19 = arith.constant dense<0.000000e+00> : vector<64x128xf32>
    %34 = tpu.matmul %32, %33, %cst_19 {dimension_numbers = #tpu.dot_dimension_numbers<[1], [0], [0], [1], [0, 0, 1, 1], [], []>} : vector<64x128xf32>, vector<128x128xf32>, vector<64x128xf32> -> vector<64x128xf32>
    %c0_20 = arith.constant 0 : index
    %c0_21 = arith.constant 0 : index
    %35 = vector.load %arg7[%c0_20, %c0_21] : memref<1x128xf32, #tpu.memory_space<vmem>>, vector<1x128xf32>
    %36 = vector.broadcast %35 : vector<1x128xf32> to vector<64x128xf32>
    %37 = arith.addf %34, %36 : vector<64x128xf32>
    %c0_22 = arith.constant 0 : index
    %c0_23 = arith.constant 0 : index
    %38 = vector.load %arg8[%c0_22, %c0_23] : memref<64x128xf32, #tpu.memory_space<vmem>>, vector<64x128xf32>
    tpu.vector_store %arg8[%c0_22, %c0_23], %37 {strides = array<i32>} : memref<64x128xf32, #tpu.memory_space<vmem>>, vector<64x128xf32>,
    return
  }
  func.func @transform_0(%arg0: i32) -> (i32, i32) {
    %c0_i32 = arith.constant 0 : i32
    %c0_i32_0 = arith.constant 0 : i32
    return %arg0, %c0_i32 : i32, i32
  }
  func.func @transform_1(%arg0: i32) -> (i32, i32) {
    %c0_i32 = arith.constant 0 : i32
    %c0_i32_0 = arith.constant 0 : i32
    return %arg0, %c0_i32 : i32, i32
  }
  func.func @transform_2(%arg0: i32) -> (i32, i32) {
    %c0_i32 = arith.constant 0 : i32
    %c0_i32_0 = arith.constant 0 : i32
    %c0_i32_1 = arith.constant 0 : i32
    return %c0_i32, %c0_i32_0 : i32, i32
  }
  func.func @transform_3(%arg0: i32) -> (i32, i32) {
    %c0_i32 = arith.constant 0 : i32
    %c0_i32_0 = arith.constant 0 : i32
    %c0_i32_1 = arith.constant 0 : i32
    return %c0_i32, %c0_i32_0 : i32, i32
  }
  func.func @transform_4(%arg0: i32) -> (i32, i32) {
    %c0_i32 = arith.constant 0 : i32
    %c0_i32_0 = arith.constant 0 : i32
    %c0_i32_1 = arith.constant 0 : i32
    return %c0_i32, %c0_i32_0 : i32, i32
  }
  func.func @transform_5(%arg0: i32) -> (i32, i32) {
    %c0_i32 = arith.constant 0 : i32
    %c0_i32_0 = arith.constant 0 : i32
    %c0_i32_1 = arith.constant 0 : i32
    return %c0_i32, %c0_i32_0 : i32, i32
  }
  func.func @transform_6(%arg0: i32) -> (i32, i32) {
    %c0_i32 = arith.constant 0 : i32
    %c0_i32_0 = arith.constant 0 : i32
    %c0_i32_1 = arith.constant 0 : i32
    return %c0_i32, %c0_i32_0 : i32, i32
  }
  func.func @transform_7(%arg0: i32) -> (i32, i32) {
    %c0_i32 = arith.constant 0 : i32
    %c0_i32_0 = arith.constant 0 : i32
    return %arg0, %c0_i32 : i32, i32
  }
}

</mosaic_0001>

<llo_original>
// kernel: tpu_custom_call.1
$region0: #{tpu_custom_call.1}
  #allocation0 [shape = 'u32[]', space=smem, size = 0x4, offset = 0x4, fixed_abs, tag = 'smem constant byte address 0x4 - core index']
  #allocation1 [shape = 'u32[72,128]{1,0:T(1,128)}', space=vmem, size = 0x9000, scoped, tag = 'internal scratch']
  %s0 = inlined_call_operand.vmem [shape: f32[128,128], index: 0, kind: input, shape index: {}]
  %s1 = inlined_call_operand.vmem [shape: f32[128,1], index: 1, kind: input, shape index: {}]
  %s2 = inlined_call_operand.hbm [shape: f32[128,128], index: 2, kind: input, shape index: {}]
  %s3 = inlined_call_operand.hbm [shape: f32[1,128], index: 3, kind: input, shape index: {}]
  %s4 = inlined_call_operand.vmem [shape: f32[4,128], index: 4, kind: input, shape index: {}]
  %s5 = inlined_call_operand.hbm [shape: f32[128,128], index: 5, kind: input, shape index: {}]
  %s6 = inlined_call_operand.vmem [shape: f32[1,128], index: 6, kind: input, shape index: {}]
  %s7 = inlined_call_operand.hbm [shape: f32[128,128], index: 7, kind: output, shape index: {}]
  %s8 = sld [smem:[#allocation0]]
  $region73: #{tpu_custom_call.1} parent=0
    _
  %s10 = ssub.s32 1, %s8
  %s11 = scalar_select 0, %s10, %s8
  $region1: #{tpu_custom_call.1} parent=0
    #allocation2 [shape = 'u8[65536]{0}', space=vmem, size = 0x10000, scoped, tag = 'input window, operand 2, single buffered']
    #allocation3 [shape = 's32[2]{0}', space=sflag, size = 0x8, scoped, tag = 'scoped memory for tpu_custom_call.1']
    #allocation4 [shape = 's32[2]{0}', space=sflag, size = 0x8, scoped, tag = 'scoped memory for tpu_custom_call.1']
    #allocation5 [shape = 'u8[512]{0}', space=vmem, size = 0x400, scoped, tag = 'input window, operand 3, single buffered']
    #allocation6 [shape = 's32[1]{0}', space=sflag, size = 0x4, scoped, tag = 'scoped memory for tpu_custom_call.1']
    #allocation7 [shape = 'u8[65536]{0}', space=vmem, size = 0x10000, scoped, tag = 'input window, operand 5, single buffered']
    #allocation8 [shape = 'u8[65536]{0}', space=vmem, size = 0x10000, scoped, tag = 'output window, operand 0']
    %12 = vsyncpa [#allocation3], 0
    %13 = vsyncpa [#allocation6], 0
    %14 = vsyncpa [#allocation4], 0
    %s15 = scalar_lea.sflag [#allocation4], 1
    %16 = vsyncpa %s15, 0
    loop: start=0, step=1, limit=4
    $region2: #{tpu_custom_call.1} parent=1 // loop_pre_header
      _
    $region3: #{tpu_custom_call.1} parent=1 // loop_header
      %s18 = sphi 0, %s22
      %p19 = scmp.ge.s32.totalorder %s18, 4
      %s28 = sphi 0, %s30
      %s31 = sphi 0, %s28
      %s32 = sphi 0, %s31
      %s48 = sphi 0, %s32
      %s54 = sphi 0, %s56
      %s57 = sphi 0, %s54
      %s58 = sphi 0, %s57
      %s74 = sphi 0, %s58
      %s78 = sphi 0, %s78
      %s80 = sphi 0, %s78
      %s81 = sphi 0, %s80
      %s95 = sphi 0, %s81
      %s99 = sphi 0, %s99
      %s101 = sphi 0, %s99
      %s102 = sphi 0, %s101
      %s116 = sphi 0, %s102
      %s120 = sphi 0, %s120
      %s122 = sphi 0, %s120
      %s123 = sphi 0, %s122
      %s137 = sphi 0, %s123
      %s141 = sphi 0, %s141
      %s143 = sphi 0, %s141
      %s144 = sphi 0, %s143
      %s158 = sphi 0, %s144
      %s162 = sphi 0, %s162
      %s164 = sphi 0, %s162
      %s165 = sphi 0, %s164
      %s179 = sphi 0, %s165
      %s185 = sphi 0, %s187
      %s188 = sphi 0, %s185
      %s189 = sphi 0, %s188
      %s205 = sphi 0, %s189
    $region4: #{tpu_custom_call.1} parent=1 // loop_header_branch
      %21 = sbr.rel (%p19) target = $region8
    $region5: #{tpu_custom_call.1} parent=1 // loop_body
      %s23 = ssub.s32 %s18, 1
      %s24 = ssub.s32 %s18, 2
      %s25 = sadd.s32 %s18, 1
      %s26 = ssub.s32 %s18, %s25
      %p27 = scmp.eq.s32.totalorder %s26, 0
      %s29 = sadd.s32 %s28, 1
      %s30 = scalar_select %p27, %s28, %s29
      %p33 = pneg %p27
      %p34 = scmp.eq.s32.totalorder %s18, 1
      %p35 = por %p33, %p34
      %p36 = scmp.ne.s32.totalorder %s28, %s31
      %p37 = scmp.eq.s32.totalorder %s18, 0
      %p38 = por %p36, %p37
      %p39 = scmp.ne.s32.totalorder %s28, %s31
      %p40 = scmp.eq.s32.totalorder %s23, 1
      %p41 = por %p39, %p40
      %p42 = scmp.ne.s32.totalorder %s31, %s32
      %p43 = scmp.eq.s32.totalorder %s23, 0
      %p44 = por %p42, %p43
      %p45 = scmp.ne.s32.totalorder %s31, %s32
      %p46 = scmp.eq.s32.totalorder %s24, 1
      %p47 = por %p45, %p46
      %p49 = scmp.ne.s32.totalorder %s32, %s48
      %p50 = scmp.eq.s32.totalorder %s24, 0
      %p51 = por %p49, %p50
      %s52 = ssub.s32 %s18, %s25
      %p53 = scmp.eq.s32.totalorder %s52, 0
      %s55 = sadd.s32 %s54, 1
      %s56 = scalar_select %p53, %s54, %s55
      %p59 = pneg %p53
      %p60 = scmp.eq.s32.totalorder %s18, 1
      %p61 = por %p59, %p60
      %p62 = scmp.ne.s32.totalorder %s54, %s57
      %p63 = scmp.eq.s32.totalorder %s18, 0
      %p64 = por %p62, %p63
      %p65 = scmp.ne.s32.totalorder %s54, %s57
      %p66 = scmp.eq.s32.totalorder %s23, 1
      %p67 = por %p65, %p66
      %p68 = scmp.ne.s32.totalorder %s57, %s58
      %p69 = scmp.eq.s32.totalorder %s23, 0
      %p70 = por %p68, %p69
      %p71 = scmp.ne.s32.totalorder %s57, %s58
      %p72 = scmp.eq.s32.totalorder %s24, 1
      %p73 = por %p71, %p72
      %p75 = scmp.ne.s32.totalorder %s58, %s74
      %p76 = scmp.eq.s32.totalorder %s24, 0
      %p77 = por %p75, %p76
      %s79 = sadd.s32 %s78, 1
      %p82 = scmp.eq.s32.totalorder %s18, 1
      %p83 = scmp.ne.s32.totalorder %s78, %s80
      %p84 = scmp.eq.s32.totalorder %s18, 0
      %p85 = por %p83, %p84
      %p86 = scmp.ne.s32.totalorder %s78, %s80
      %p87 = scmp.eq.s32.totalorder %s23, 1
      %p88 = por %p86, %p87
      %p89 = scmp.ne.s32.totalorder %s80, %s81
      %p90 = scmp.eq.s32.totalorder %s23, 0
      %p91 = por %p89, %p90
      %p92 = scmp.ne.s32.totalorder %s80, %s81
      %p93 = scmp.eq.s32.totalorder %s24, 1
      %p94 = por %p92, %p93
      %p96 = scmp.ne.s32.totalorder %s81, %s95
      %p97 = scmp.eq.s32.totalorder %s24, 0
      %p98 = por %p96, %p97
      %s100 = sadd.s32 %s99, 1
      %p103 = scmp.eq.s32.totalorder %s18, 1
      %p104 = scmp.ne.s32.totalorder %s99, %s101
      %p105 = scmp.eq.s32.totalorder %s18, 0
      %p106 = por %p104, %p105
      %p107 = scmp.ne.s32.totalorder %s99, %s101
      %p108 = scmp.eq.s32.totalorder %s23, 1
      %p109 = por %p107, %p108
      %p110 = scmp.ne.s32.totalorder %s101, %s102
      %p111 = scmp.eq.s32.totalorder %s23, 0
      %p112 = por %p110, %p111
      %p113 = scmp.ne.s32.totalorder %s101, %s102
      %p114 = scmp.eq.s32.totalorder %s24, 1
      %p115 = por %p113, %p114
      %p117 = scmp.ne.s32.totalorder %s102, %s116
      %p118 = scmp.eq.s32.totalorder %s24, 0
      %p119 = por %p117, %p118
      %s121 = sadd.s32 %s120, 1
      %p124 = scmp.eq.s32.totalorder %s18, 1
      %p125 = scmp.ne.s32.totalorder %s120, %s122
      %p126 = scmp.eq.s32.totalorder %s18, 0
      %p127 = por %p125, %p126
      %p128 = scmp.ne.s32.totalorder %s120, %s122
      %p129 = scmp.eq.s32.totalorder %s23, 1
      %p130 = por %p128, %p129
      %p131 = scmp.ne.s32.totalorder %s122, %s123
      %p132 = scmp.eq.s32.totalorder %s23, 0
      %p133 = por %p131, %p132
      %p134 = scmp.ne.s32.totalorder %s122, %s123
      %p135 = scmp.eq.s32.totalorder %s24, 1
      %p136 = por %p134, %p135
      %p138 = scmp.ne.s32.totalorder %s123, %s137
      %p139 = scmp.eq.s32.totalorder %s24, 0
      %p140 = por %p138, %p139
      %s142 = sadd.s32 %s141, 1
      %p145 = scmp.eq.s32.totalorder %s18, 1
      %p146 = scmp.ne.s32.totalorder %s141, %s143
      %p147 = scmp.eq.s32.totalorder %s18, 0
      %p148 = por %p146, %p147
      %p149 = scmp.ne.s32.totalorder %s141, %s143
      %p150 = scmp.eq.s32.totalorder %s23, 1
      %p151 = por %p149, %p150
      %p152 = scmp.ne.s32.totalorder %s143, %s144
      %p153 = scmp.eq.s32.totalorder %s23, 0
      %p154 = por %p152, %p153
      %p155 = scmp.ne.s32.totalorder %s143, %s144
      %p156 = scmp.eq.s32.totalorder %s24, 1
      %p157 = por %p155, %p156
      %p159 = scmp.ne.s32.totalorder %s144, %s158
      %p160 = scmp.eq.s32.totalorder %s24, 0
      %p161 = por %p159, %p160
      %s163 = sadd.s32 %s162, 1
      %p166 = scmp.eq.s32.totalorder %s18, 1
      %p167 = scmp.ne.s32.totalorder %s162, %s164
      %p168 = scmp.eq.s32.totalorder %s18, 0
      %p169 = por %p167, %p168
      %p170 = scmp.ne.s32.totalorder %s162, %s164
      %p171 = scmp.eq.s32.totalorder %s23, 1
      %p172 = por %p170, %p171
      %p173 = scmp.ne.s32.totalorder %s164, %s165
      %p174 = scmp.eq.s32.totalorder %s23, 0
      %p175 = por %p173, %p174
      %p176 = scmp.ne.s32.totalorder %s164, %s165
      %p177 = scmp.eq.s32.totalorder %s24, 1
      %p178 = por %p176, %p177
      %p180 = scmp.ne.s32.totalorder %s165, %s179
      %p181 = scmp.eq.s32.totalorder %s24, 0
      %p182 = por %p180, %p181
      %s183 = ssub.s32 %s18, %s25
      %p184 = scmp.eq.s32.totalorder %s183, 0
      %s186 = sadd.s32 %s185, 1
      %s187 = scalar_select %p184, %s185, %s186
      %p190 = pneg %p184
      %p191 = scmp.eq.s32.totalorder %s18, 1
      %p192 = por %p190, %p191
      %p193 = scmp.ne.s32.totalorder %s185, %s188
      %p194 = scmp.eq.s32.totalorder %s18, 0
      %p195 = por %p193, %p194
      %p196 = scmp.ne.s32.totalorder %s185, %s188
      %p197 = scmp.eq.s32.totalorder %s23, 1
      %p198 = por %p196, %p197
      %p199 = scmp.ne.s32.totalorder %s188, %s189
      %p200 = scmp.eq.s32.totalorder %s23, 0
      %p201 = por %p199, %p200
      %p202 = scmp.ne.s32.totalorder %s188, %s189
      %p203 = scmp.eq.s32.totalorder %s24, 1
      %p204 = por %p202, %p203
      %p206 = scmp.ne.s32.totalorder %s189, %s205
      %p207 = scmp.eq.s32.totalorder %s24, 0
      %p208 = por %p206, %p207
      %p209 = scmp.le.s32.totalorder 1, %s18
      %p210 = scmp.lt.s32.totalorder %s18, 3
      %p211 = pnand %p209, %p210
      %p212 = pneg %p211
      // Predicated region
      $region9: #{tpu_custom_call.1} parent=5 // pred_check
        _
      $region10: #{tpu_custom_call.1} parent=5 // pred_check_branch
        %214 = sbr.rel (%p211) target = $region12
      $region11: #{tpu_custom_call.1} parent=5 // pred_region
        %s215 = ssub.s32 %s18, 1
        // Predicated region
        $region13: #{tpu_custom_call.1} parent=11 // pred_check
          %p216 = pneg %p91
        $region14: #{tpu_custom_call.1} parent=11 // pred_check_branch
          %218 = sbr.rel (%p216) target = $region16
        $region15: #{tpu_custom_call.1} parent=11 // pred_region
          %220 = vsyncadd [#allocation3], 0
          %s221 = sshll.u32 %s2, 4
          %s222 = int_to_ptr.hbm [resolvable:$true] %s221
          %s223 = sshll.u32 [#allocation2], 4
          %s224 = int_to_ptr.vmem [resolvable:$true] %s223
          %229 = dma.hbm_to_vmem [thread:$0]  %s222, 2048, %s224, [#allocation3], 128, 128, 8
        $region16: #{tpu_custom_call.1} parent=11 // pred_fallthru
          _
        // Predicated region
        $region17: #{tpu_custom_call.1} parent=11 // pred_check
          %p230 = pneg %p112
        $region18: #{tpu_custom_call.1} parent=11 // pred_check_branch
          %232 = sbr.rel (%p230) target = $region20
        $region19: #{tpu_custom_call.1} parent=11 // pred_region
          %234 = vsyncadd [#allocation6], 0
          %s236 = sshll.u32 %s3, 4
          %s237 = int_to_ptr.hbm [resolvable:$true] %s236
          %s238 = sshll.u32 [#allocation5], 4
          %s239 = int_to_ptr.vmem [resolvable:$true] %s238
          %241 = dma.hbm_to_vmem [thread:$0]  %s237, 16, %s239, [#allocation6]
        $region20: #{tpu_custom_call.1} parent=11 // pred_fallthru
          _
        // Predicated region
        $region21: #{tpu_custom_call.1} parent=11 // pred_check
          %p242 = pneg %p133
        $region22: #{tpu_custom_call.1} parent=11 // pred_check_branch
          %244 = sbr.rel (%p242) target = $region24
        $region23: #{tpu_custom_call.1} parent=11 // pred_region
          _
        $region24: #{tpu_custom_call.1} parent=11 // pred_fallthru
          _
        // Predicated region
        $region25: #{tpu_custom_call.1} parent=11 // pred_check
          %p245 = pneg %p154
        $region26: #{tpu_custom_call.1} parent=11 // pred_check_branch
          %247 = sbr.rel (%p245) target = $region28
        $region27: #{tpu_custom_call.1} parent=11 // pred_region
          %249 = vsyncadd [#allocation6], 0
          %s250 = sshll.u32 %s5, 4
          %s251 = int_to_ptr.hbm [resolvable:$true] %s250
          %s252 = sshll.u32 [#allocation7], 4
          %s253 = int_to_ptr.vmem [resolvable:$true] %s252
          %258 = dma.hbm_to_vmem [thread:$0]  %s251, 2048, %s253, [#allocation6], 128, 128, 8
        $region28: #{tpu_custom_call.1} parent=11 // pred_fallthru
          _
        // Predicated region
        $region29: #{tpu_custom_call.1} parent=11 // pred_check
          %p259 = pneg %p175
        $region30: #{tpu_custom_call.1} parent=11 // pred_check_branch
          %261 = sbr.rel (%p259) target = $region32
        $region31: #{tpu_custom_call.1} parent=11 // pred_region
          _
        $region32: #{tpu_custom_call.1} parent=11 // pred_fallthru
          _
      $region12: #{tpu_custom_call.1} parent=5 // pred_fallthru
        _
      %p262 = scmp.lt.s32.totalorder %s18, 2
      // Predicated region
      $region33: #{tpu_custom_call.1} parent=5 // pred_check
        %p263 = pneg %p262
      $region34: #{tpu_custom_call.1} parent=5 // pred_check_branch
        %265 = sbr.rel (%p263) target = $region36
      $region35: #{tpu_custom_call.1} parent=5 // pred_region
        // Predicated region
        $region37: #{tpu_custom_call.1} parent=35 // pred_check
          %p266 = pneg %p38
        $region38: #{tpu_custom_call.1} parent=35 // pred_check_branch
          %268 = sbr.rel (%p266) target = $region40
        $region39: #{tpu_custom_call.1} parent=35 // pred_region
          %s269 = smul.u32 8, %s18
          %p270 = scmp.lt.s32.totalorder %s269, 15
          %s271 = scalar_select %p270, %s269, 15
          %s272 = smul.addr %s271, 8
          %s273 = scalar_lea.vmem %s0, %s272
          %s274 = smul.u32 8, %s18
        $region40: #{tpu_custom_call.1} parent=35 // pred_fallthru
          _
        // Predicated region
        $region41: #{tpu_custom_call.1} parent=35 // pred_check
          %p275 = pneg %p64
        $region42: #{tpu_custom_call.1} parent=35 // pred_check_branch
          %277 = sbr.rel (%p275) target = $region44
        $region43: #{tpu_custom_call.1} parent=35 // pred_region
          %s278 = smul.u32 8, %s18
          %p279 = scmp.lt.s32.totalorder %s278, 15
          %s280 = scalar_select %p279, %s278, 15
          %s281 = smul.addr %s280, 8
          %s282 = scalar_lea.vmem %s1, %s281
          %s283 = smul.u32 8, %s18
        $region44: #{tpu_custom_call.1} parent=35 // pred_fallthru
          _
      $region36: #{tpu_custom_call.1} parent=5 // pred_fallthru
        _
      %p284 = scmp.le.s32.totalorder 1, %s18
      %p285 = scmp.lt.s32.totalorder %s18, 3
      %p286 = pnand %p284, %p285
      %p287 = pneg %p286
      // Predicated region
      $region45: #{tpu_custom_call.1} parent=5 // pred_check
        _
      $region46: #{tpu_custom_call.1} parent=5 // pred_check_branch
        %289 = sbr.rel (%p286) target = $region48
      $region47: #{tpu_custom_call.1} parent=5 // pred_region
        %s290 = ssub.s32 %s18, 1
        // Predicated region
        $region49: #{tpu_custom_call.1} parent=47 // pred_check
          %p291 = pneg %p91
        $region50: #{tpu_custom_call.1} parent=47 // pred_check_branch
          %293 = sbr.rel (%p291) target = $region52
        $region51: #{tpu_custom_call.1} parent=47 // pred_region
          %295 = dma.done [#allocation3], 2048
        $region52: #{tpu_custom_call.1} parent=47 // pred_fallthru
          _
        // Predicated region
        $region53: #{tpu_custom_call.1} parent=47 // pred_check
          %p296 = pneg %p112
        $region54: #{tpu_custom_call.1} parent=47 // pred_check_branch
          %298 = sbr.rel (%p296) target = $region56
        $region55: #{tpu_custom_call.1} parent=47 // pred_region
          %300 = dma.done [#allocation6], 16
        $region56: #{tpu_custom_call.1} parent=47 // pred_fallthru
          _
        // Predicated region
        $region57: #{tpu_custom_call.1} parent=47 // pred_check
          %p301 = pneg %p154
        $region58: #{tpu_custom_call.1} parent=47 // pred_check_branch
          %303 = sbr.rel (%p301) target = $region60
        $region59: #{tpu_custom_call.1} parent=47 // pred_region
          %305 = dma.done [#allocation6], 2048
        $region60: #{tpu_custom_call.1} parent=47 // pred_fallthru
          _
        %s306 = smul.u32 8, %s23
        %p307 = scmp.lt.s32.totalorder %s306, 15
        %s308 = scalar_select %p307, %s306, 15
        %s309 = smul.addr %s308, 8
        %s310 = scalar_lea.vmem %s0, %s309
        %p311 = pneg %p44
        %p312 = pneg %p41
        %s313 = smul.u32 8, %s23
        %p314 = scmp.lt.s32.totalorder %s313, 15
        %s315 = scalar_select %p314, %s313, 15
        %s316 = smul.addr %s315, 8
        %s317 = scalar_lea.vmem %s1, %s316
        %p318 = pneg %p70
        %p319 = pneg %p67
        %p320 = pneg %p91
        %p321 = pneg %p88
        %p322 = pneg %p112
        %p323 = pneg %p109
        %p324 = pneg %p133
        %p325 = pneg %p130
        %p326 = pneg %p154
        %p327 = pneg %p151
        %p328 = pneg %p175
        %p329 = pneg %p172
        %p330 = pneg %p201
        %p331 = pneg %p198
        %s332 = sand.u32 %s188, 1
        %s333 = scalar_lea.sflag [#allocation4], %s332
        %s334 = sand.u32 %s188, 1
        %s335 = smul.addr %s334, 64
        %s336 = scalar_lea.vmem [#allocation8], %s335
        %s337 = smul.u32 8, %s23
        %p338 = scmp.lt.s32.totalorder %s337, 15
        %s339 = scalar_select %p338, %s337, 15
        %s340 = smul.addr %s339, 8
        %s341 = scalar_lea.vmem %s0, %s340
        %s342 = smul.u32 8, %s23
        %s343 = smul.u32 8, %s23
        %p344 = scmp.lt.s32.totalorder %s343, 15
        %s345 = scalar_select %p344, %s343, 15
        %s346 = smul.addr %s345, 8
        %s347 = scalar_lea.vmem %s1, %s346
        %s348 = smul.u32 8, %s23
        %s349 = smul.u32 8, %s23
        %v350 = vld [vmem:[%s341] sm:$0xff]
        %v351 = vld [vmem:[%s341 + $0x8] sm:$0xff]
        %v352 = vld [vmem:[%s341 + $0x10] sm:$0xff]
        %v353 = vld [vmem:[%s341 + $0x18] sm:$0xff]
        %v354 = vld [vmem:[%s341 + $0x20] sm:$0xff]
        %v355 = vld [vmem:[%s341 + $0x28] sm:$0xff]
        %v356 = vld [vmem:[%s341 + $0x30] sm:$0xff]
        %v357 = vld [vmem:[%s341 + $0x38] sm:$0xff]
        %v358 = vld [vmem:[#allocation2] sm:$0xff]
        %v359 = vld [vmem:[#allocation2 + $0x8] sm:$0xff]
        %v360 = vld [vmem:[#allocation2 + $0x10] sm:$0xff]
        %v361 = vld [vmem:[#allocation2 + $0x18] sm:$0xff]
        %v362 = vld [vmem:[#allocation2 + $0x20] sm:$0xff]
        %v363 = vld [vmem:[#allocation2 + $0x28] sm:$0xff]
        %v364 = vld [vmem:[#allocation2 + $0x30] sm:$0xff]
        %v365 = vld [vmem:[#allocation2 + $0x38] sm:$0xff]
        %v366 = vld [vmem:[#allocation2 + $0x40] sm:$0xff]
        %v367 = vld [vmem:[#allocation2 + $0x48] sm:$0xff]
        %v368 = vld [vmem:[#allocation2 + $0x50] sm:$0xff]
        %v369 = vld [vmem:[#allocation2 + $0x58] sm:$0xff]
        %v370 = vld [vmem:[#allocation2 + $0x60] sm:$0xff]
        %v371 = vld [vmem:[#allocation2 + $0x68] sm:$0xff]
        %v372 = vld [vmem:[#allocation2 + $0x70] sm:$0xff]
        %v373 = vld [vmem:[#allocation2 + $0x78] sm:$0xff]
        %v374 = vld [vmem:[#allocation5] sm:$0x1]
        %v376 = vperm.slane %v374, 0
        %378 = vmatpush.msra.mxu0 %v373
        %379 = vmatpush.msra.mxu0 %v372
        %380 = vmatpush.msra.mxu0 %v371
        %381 = vmatpush.msra.mxu0 %v370
        %382 = vmatpush.msra.mxu0 %v369
        %383 = vmatpush.msra.mxu0 %v368
        %384 = vmatpush.msra.mxu0 %v367
        %385 = vmatpush.msra.mxu0 %v366
        %386 = vmatpush.msra.mxu0 %v365
        %387 = vmatpush.msra.mxu0 %v364
        %388 = vmatpush.msra.mxu0 %v363
        %389 = vmatpush.msra.mxu0 %v362
        %390 = vmatpush.msra.mxu0 %v361
        %391 = vmatpush.msra.mxu0 %v360
        %392 = vmatpush.msra.mxu0 %v359
        %393 = vmatpush.msra.mxu0 %v358
        %394 = vmatmul.f32.gmra.mxu0 %v350
        %v395 = vpop.f32.mrf.mxu0
        %v396 = vadd.f32 %v376, %v395
        %397 = vmatmul.f32.gmra.mxu0 %v351
        %v398 = vpop.f32.mrf.mxu0
        %v399 = vadd.f32 %v376, %v398
        %400 = vmatmul.f32.gmra.mxu0 %v352
        %v401 = vpop.f32.mrf.mxu0
        %v402 = vadd.f32 %v376, %v401
        %403 = vmatmul.f32.gmra.mxu0 %v353
        %v404 = vpop.f32.mrf.mxu0
        %v405 = vadd.f32 %v376, %v404
        %406 = vmatmul.f32.gmra.mxu0 %v354
        %v407 = vpop.f32.mrf.mxu0
        %v408 = vadd.f32 %v376, %v407
        %409 = vmatmul.f32.gmra.mxu0 %v355
        %v410 = vpop.f32.mrf.mxu0
        %v411 = vadd.f32 %v376, %v410
        %412 = vmatmul.f32.gmra.mxu0 %v356
        %v413 = vpop.f32.mrf.mxu0
        %v414 = vadd.f32 %v376, %v413
        %415 = vmatmul.f32.gmra.mxu0 %v357
        %v416 = vpop.f32.mrf.mxu0
        %v417 = vadd.f32 %v376, %v416
        %418 = vdwg.mxu0
        %v419 = vmax.f32 %v396, 0.0
        %v420 = vmax.f32 %v399, 0.0
        %v421 = vmax.f32 %v402, 0.0
        %v422 = vmax.f32 %v405, 0.0
        %v423 = vmax.f32 %v408, 0.0
        %v424 = vmax.f32 %v411, 0.0
        %v425 = vmax.f32 %v414, 0.0
        %v426 = vmax.f32 %v417, 0.0
        %v427 = vld [vmem:[%s4] sm:$0x1]
        %v428 = vld [vmem:[%s4 + $0x1] sm:$0x1]
        %v429 = vld [vmem:[%s4 + $0x2] sm:$0x1]
        %v430 = vld [vmem:[%s4 + $0x3] sm:$0x1]
        %v431 = vperm.slane %v427, 0
        %v432 = vmul.f32 %v419, %v431
        %v433 = vmul.f32 %v420, %v431
        %v434 = vmul.f32 %v421, %v431
        %v435 = vmul.f32 %v422, %v431
        %v436 = vmul.f32 %v423, %v431
        %v437 = vmul.f32 %v424, %v431
        %v438 = vmul.f32 %v425, %v431
        %v439 = vmul.f32 %v426, %v431
        %440 = vadd.xlane.f32.xlu0 %v432
        %v441 = vpop.xlane.xlu0 %440
        %442 = vadd.xlane.f32.xlu0 %v433
        %v443 = vpop.xlane.xlu0 %442
        %444 = vadd.xlane.f32.xlu0 %v434
        %v445 = vpop.xlane.xlu0 %444
        %446 = vadd.xlane.f32.xlu0 %v435
        %v447 = vpop.xlane.xlu0 %446
        %448 = vadd.xlane.f32.xlu0 %v436
        %v449 = vpop.xlane.xlu0 %448
        %450 = vadd.xlane.f32.xlu0 %v437
        %v451 = vpop.xlane.xlu0 %450
        %452 = vadd.xlane.f32.xlu0 %v438
        %v453 = vpop.xlane.xlu0 %452
        %454 = vadd.xlane.f32.xlu0 %v439
        %v455 = vpop.xlane.xlu0 %454
        %v456 = vperm.slane %v428, 0
        %v457 = vmul.f32 %v419, %v456
        %v458 = vmul.f32 %v420, %v456
        %v459 = vmul.f32 %v421, %v456
        %v460 = vmul.f32 %v422, %v456
        %v461 = vmul.f32 %v423, %v456
        %v462 = vmul.f32 %v424, %v456
        %v463 = vmul.f32 %v425, %v456
        %v464 = vmul.f32 %v426, %v456
        %465 = vadd.xlane.f32.xlu0 %v457
        %v466 = vpop.xlane.xlu0 %465
        %467 = vadd.xlane.f32.xlu0 %v458
        %v468 = vpop.xlane.xlu0 %467
        %469 = vadd.xlane.f32.xlu0 %v459
        %v470 = vpop.xlane.xlu0 %469
        %471 = vadd.xlane.f32.xlu0 %v460
        %v472 = vpop.xlane.xlu0 %471
        %473 = vadd.xlane.f32.xlu0 %v461
        %v474 = vpop.xlane.xlu0 %473
        %475 = vadd.xlane.f32.xlu0 %v462
        %v476 = vpop.xlane.xlu0 %475
        %477 = vadd.xlane.f32.xlu0 %v463
        %v478 = vpop.xlane.xlu0 %477
        %479 = vadd.xlane.f32.xlu0 %v464
        %v480 = vpop.xlane.xlu0 %479
        %v481 = vmul.f32 %v466, 0.5
        %v482 = vmul.f32 %v468, 0.5
        %v483 = vmul.f32 %v470, 0.5
        %v484 = vmul.f32 %v472, 0.5
        %v485 = vmul.f32 %v474, 0.5
        %v486 = vmul.f32 %v476, 0.5
        %v487 = vmul.f32 %v478, 0.5
        %v488 = vmul.f32 %v480, 0.5
        %v489 = vmul.f32 %v481, 1.442695
        %v490 = vpow.pop %v489
        %v491 = vmul.f32 %v482, 1.442695
        %v492 = vpow.pop %v491
        %v493 = vmul.f32 %v483, 1.442695
        %v494 = vpow.pop %v493
        %v495 = vmul.f32 %v484, 1.442695
        %v496 = vpow.pop %v495
        %v497 = vmul.f32 %v485, 1.442695
        %v498 = vpow.pop %v497
        %v499 = vmul.f32 %v486, 1.442695
        %v500 = vpow.pop %v499
        %v501 = vmul.f32 %v487, 1.442695
        %v502 = vpow.pop %v501
        %v503 = vmul.f32 %v488, 1.442695
        %v504 = vpow.pop %v503
        %v505 = vld [vmem:[%s347] sm:$0xff]
        %v506 = vld [vmem:[%s347 + $0x8] sm:$0xff]
        %v507 = vld [vmem:[%s347 + $0x10] sm:$0xff]
        %v508 = vld [vmem:[%s347 + $0x18] sm:$0xff]
        %v509 = vld [vmem:[%s347 + $0x20] sm:$0xff]
        %v510 = vld [vmem:[%s347 + $0x28] sm:$0xff]
        %v511 = vld [vmem:[%s347 + $0x30] sm:$0xff]
        %v512 = vld [vmem:[%s347 + $0x38] sm:$0xff]
        %v513 = vmul.f32 %v490, %v505
        %v514 = vmul.f32 %v492, %v506
        %v515 = vmul.f32 %v494, %v507
        %v516 = vmul.f32 %v496, %v508
        %v517 = vmul.f32 %v498, %v509
        %v518 = vmul.f32 %v500, %v510
        %v519 = vmul.f32 %v502, %v511
        %v520 = vmul.f32 %v504, %v512
        %v521 = vadd.f32 %v441, %v513
        %v522 = vadd.f32 %v443, %v514
        %v523 = vadd.f32 %v445, %v515
        %v524 = vadd.f32 %v447, %v516
        %v525 = vadd.f32 %v449, %v517
        %v526 = vadd.f32 %v451, %v518
        %v527 = vadd.f32 %v453, %v519
        %v528 = vadd.f32 %v455, %v520
        %530 = vset.pattern.permute.xlu0 0
        %531 = vperm.xlu0 %530, %v521
        %v532 = vpop.permute.xlu0 %531
        %535 = vset.pattern.permute.xlu0 0
        %536 = vperm.xlu0 %535, %v522
        %v537 = vpop.permute.xlu0 %536
        %540 = vset.pattern.permute.xlu0 0
        %541 = vperm.xlu0 %540, %v523
        %v542 = vpop.permute.xlu0 %541
        %545 = vset.pattern.permute.xlu0 0
        %546 = vperm.xlu0 %545, %v524
        %v547 = vpop.permute.xlu0 %546
        %550 = vset.pattern.permute.xlu0 0
        %551 = vperm.xlu0 %550, %v525
        %v552 = vpop.permute.xlu0 %551
        %555 = vset.pattern.permute.xlu0 0
        %556 = vperm.xlu0 %555, %v526
        %v557 = vpop.permute.xlu0 %556
        %560 = vset.pattern.permute.xlu0 0
        %561 = vperm.xlu0 %560, %v527
        %v562 = vpop.permute.xlu0 %561
        %565 = vset.pattern.permute.xlu0 0
        %566 = vperm.xlu0 %565, %v528
        %v567 = vpop.permute.xlu0 %566
        %v569 = vperm.slane %v429, 0
        %v570 = vmul.f32 %v532, %v569
        %v571 = vmul.f32 %v537, %v569
        %v572 = vmul.f32 %v542, %v569
        %v573 = vmul.f32 %v547, %v569
        %v574 = vmul.f32 %v552, %v569
        %v575 = vmul.f32 %v557, %v569
        %v576 = vmul.f32 %v562, %v569
        %v577 = vmul.f32 %v567, %v569
        %v578 = vperm.slane %v430, 0
        %v579 = vadd.f32 %v570, %v578
        %v580 = vadd.f32 %v571, %v578
        %v581 = vadd.f32 %v572, %v578
        %v582 = vadd.f32 %v573, %v578
        %v583 = vadd.f32 %v574, %v578
        %v584 = vadd.f32 %v575, %v578
        %v585 = vadd.f32 %v576, %v578
        %v586 = vadd.f32 %v577, %v578
        %v587 = vmax.f32 %v579, 0.0
        %v588 = vmax.f32 %v580, 0.0
        %v589 = vmax.f32 %v581, 0.0
        %v590 = vmax.f32 %v582, 0.0
        %v591 = vmax.f32 %v583, 0.0
        %v592 = vmax.f32 %v584, 0.0
        %v593 = vmax.f32 %v585, 0.0
        %v594 = vmax.f32 %v586, 0.0
        %v595 = vld [vmem:[#allocation7] sm:$0xff]
        %v596 = vld [vmem:[#allocation7 + $0x8] sm:$0xff]
        %v597 = vld [vmem:[#allocation7 + $0x10] sm:$0xff]
        %v598 = vld [vmem:[#allocation7 + $0x18] sm:$0xff]
        %v599 = vld [vmem:[#allocation7 + $0x20] sm:$0xff]
        %v600 = vld [vmem:[#allocation7 + $0x28] sm:$0xff]
        %v601 = vld [vmem:[#allocation7 + $0x30] sm:$0xff]
        %v602 = vld [vmem:[#allocation7 + $0x38] sm:$0xff]
        %v603 = vld [vmem:[#allocation7 + $0x40] sm:$0xff]
        %v604 = vld [vmem:[#allocation7 + $0x48] sm:$0xff]
        %v605 = vld [vmem:[#allocation7 + $0x50] sm:$0xff]
        %v606 = vld [vmem:[#allocation7 + $0x58] sm:$0xff]
        %v607 = vld [vmem:[#allocation7 + $0x60] sm:$0xff]
        %v608 = vld [vmem:[#allocation7 + $0x68] sm:$0xff]
        %v609 = vld [vmem:[#allocation7 + $0x70] sm:$0xff]
        %v610 = vld [vmem:[#allocation7 + $0x78] sm:$0xff]
        %v611 = vld [vmem:[%s6] sm:$0x1]
        %v613 = vperm.slane %v611, 0
        %615 = vmatpush.msra.mxu0 %v610
        %616 = vmatpush.msra.mxu0 %v609
        %617 = vmatpush.msra.mxu0 %v608
        %618 = vmatpush.msra.mxu0 %v607
        %619 = vmatpush.msra.mxu0 %v606
        %620 = vmatpush.msra.mxu0 %v605
        %621 = vmatpush.msra.mxu0 %v604
        %622 = vmatpush.msra.mxu0 %v603
        %623 = vmatpush.msra.mxu0 %v602
        %624 = vmatpush.msra.mxu0 %v601
        %625 = vmatpush.msra.mxu0 %v600
        %626 = vmatpush.msra.mxu0 %v599
        %627 = vmatpush.msra.mxu0 %v598
        %628 = vmatpush.msra.mxu0 %v597
        %629 = vmatpush.msra.mxu0 %v596
        %630 = vmatpush.msra.mxu0 %v595
        %631 = vmatmul.f32.gmra.mxu0 %v587
        %v632 = vpop.f32.mrf.mxu0
        %v633 = vadd.f32 %v613, %v632
        %634 = vmatmul.f32.gmra.mxu0 %v588
        %v635 = vpop.f32.mrf.mxu0
        %v636 = vadd.f32 %v613, %v635
        %637 = vmatmul.f32.gmra.mxu0 %v589
        %v638 = vpop.f32.mrf.mxu0
        %v639 = vadd.f32 %v613, %v638
        %640 = vmatmul.f32.gmra.mxu0 %v590
        %v641 = vpop.f32.mrf.mxu0
        %v642 = vadd.f32 %v613, %v641
        %643 = vmatmul.f32.gmra.mxu0 %v591
        %v644 = vpop.f32.mrf.mxu0
        %v645 = vadd.f32 %v613, %v644
        %646 = vmatmul.f32.gmra.mxu0 %v592
        %v647 = vpop.f32.mrf.mxu0
        %v648 = vadd.f32 %v613, %v647
        %649 = vmatmul.f32.gmra.mxu0 %v593
        %v650 = vpop.f32.mrf.mxu0
        %v651 = vadd.f32 %v613, %v650
        %652 = vmatmul.f32.gmra.mxu0 %v594
        %v653 = vpop.f32.mrf.mxu0
        %v654 = vadd.f32 %v613, %v653
        %655 = vdwg.mxu0
        %656 = vst [vmem:[%s336] sm:$0xff] %v633
        %657 = vst [vmem:[%s336 + $0x8] sm:$0xff] %v636
        %658 = vst [vmem:[%s336 + $0x10] sm:$0xff] %v639
        %659 = vst [vmem:[%s336 + $0x18] sm:$0xff] %v642
        %660 = vst [vmem:[%s336 + $0x20] sm:$0xff] %v645
        %661 = vst [vmem:[%s336 + $0x28] sm:$0xff] %v648
        %662 = vst [vmem:[%s336 + $0x30] sm:$0xff] %v651
        %663 = vst [vmem:[%s336 + $0x38] sm:$0xff] %v654
        %s664 = sand.u32 %s188, 1
        %s665 = scalar_lea.sflag [#allocation4], %s664
        %s666 = sand.u32 %s188, 1
        %s667 = smul.addr %s666, 64
        %s668 = scalar_lea.vmem [#allocation8], %s667
        // Predicated region
        $region61: #{tpu_custom_call.1} parent=47 // pred_check
          %p669 = pneg %p198
        $region62: #{tpu_custom_call.1} parent=47 // pred_check_branch
          %671 = sbr.rel (%p669) target = $region64
        $region63: #{tpu_custom_call.1} parent=47 // pred_region
          %s672 = smul.u32 8, %s23
          %674 = vsyncadd %s665, 0
          %s675 = smul.addr %s672, 8
          %s676 = scalar_lea.hbm %s7, %s675
          %s677 = sshll.u32 %s668, 4
          %s678 = int_to_ptr.vmem [resolvable:$true] %s677
          %s679 = sshll.u32 %s676, 4
          %s680 = int_to_ptr.hbm [resolvable:$true] %s679
          %685 = dma.vmem_to_hbm [thread:$0]  %s678, 1024, %s680, %s665, 128, 128, 8
        $region64: #{tpu_custom_call.1} parent=47 // pred_fallthru
          _
      $region48: #{tpu_custom_call.1} parent=5 // pred_fallthru
        _
      %p686 = scmp.le.s32.totalorder 2, %s18
      // Predicated region
      $region65: #{tpu_custom_call.1} parent=5 // pred_check
        %p687 = pneg %p686
      $region66: #{tpu_custom_call.1} parent=5 // pred_check_branch
        %689 = sbr.rel (%p687) target = $region68
      $region67: #{tpu_custom_call.1} parent=5 // pred_region
        %s690 = ssub.s32 %s18, 2
        // Predicated region
        $region69: #{tpu_custom_call.1} parent=67 // pred_check
          %p691 = pneg %p204
        $region70: #{tpu_custom_call.1} parent=67 // pred_check_branch
          %693 = sbr.rel (%p691) target = $region72
        $region71: #{tpu_custom_call.1} parent=67 // pred_region
          %s694 = sand.u32 %s189, 1
          %s695 = scalar_lea.sflag [#allocation4], %s694
          %s696 = sand.u32 %s189, 1
          %s697 = smul.addr %s696, 64
          %s698 = scalar_lea.vmem [#allocation8], %s697
          %700 = dma.done %s695, 1024
        $region72: #{tpu_custom_call.1} parent=67 // pred_fallthru
          _
      $region68: #{tpu_custom_call.1} parent=5 // pred_fallthru
        _
    $region6: #{tpu_custom_call.1} parent=1 // loop_footer
      %s22 = sadd.s32 1, %s18
    $region7: #{tpu_custom_call.1} parent=1 // loop_footer_branch
      %17 = sbr.rel target = $region3
    $region8: #{tpu_custom_call.1} parent=1 // loop_exit
      _
    %701 = vsyncpa [#allocation3], 1
    %s702 = scalar_lea.sflag [#allocation3], 1
    %703 = vsyncpa %s702, 1
    %704 = vsyncpa [#allocation6], 1
    %705 = vsyncpa [#allocation4], 1
    %s706 = scalar_lea.sflag [#allocation4], 1
    %707 = vsyncpa %s706, 1

</llo_original>
